<compile_context>
chip_gen: v7x
topology: tpu7x:2x2x1
jax: 0.10.0
libtpu: 0.0.40
codegen_flags: <defaults>
</compile_context>

<pallas_src>
import math

import jax
import jax.numpy as jnp
from jax.experimental import pallas as pl
from jax.experimental.pallas import tpu as pltpu


# ----------------------------------------------------------------------------
# Parameter setup (deterministic, identical to the PyTorch __init__)
# ----------------------------------------------------------------------------
def make_positional_encoding_table(d_model: int, max_len: int = 17,
                                   dtype=jnp.float32) -> jnp.ndarray:
    """Sinusoidal table, shape (max_len, d_model)."""
    assert d_model % 2 == 0, "d_model must be even (same constraint as the PyTorch module)"
    position = jnp.arange(0, max_len, dtype=jnp.float32)[:, None]            # (L, 1)
    div_term = jnp.exp(
        jnp.arange(0, d_model, 2, dtype=jnp.float32) * (-math.log(10000.0) / d_model)
    )                                                                         # (D/2,)
    pe = jnp.zeros((max_len, d_model), jnp.float32)
    pe = pe.at[:, 0::2].set(jnp.sin(position * div_term))
    pe = pe.at[:, 1::2].set(jnp.cos(position * div_term))
    return pe.astype(dtype)


def prepare_pe(pe_table: jnp.ndarray, seq_len: int, dtype) -> jnp.ndarray:
    """Slice/cast/flatten the PE table once at setup time -> (1, S*D)."""
    assert seq_len <= pe_table.shape[0], "seq_len exceeds max_len of the PE table"
    d_model = pe_table.shape[-1]
    return pe_table[:seq_len].astype(dtype).reshape(1, seq_len * d_model)


# ----------------------------------------------------------------------------
# Kernel
# ----------------------------------------------------------------------------
def _add_pe_kernel(x_ref, pe_ref, o_ref):
    # x_ref: (TB, TSD) flattened activation tile
    # pe_ref: (1, TSD) positional-encoding slab (broadcasts over sublanes)
    o_ref[...] = x_ref[...] + pe_ref[...]


# ----------------------------------------------------------------------------
# Tiling policy
# ----------------------------------------------------------------------------
_VMEM_BUDGET_BYTES = 10 << 20   # conservative: fits v5e's 16 MiB scoped default
                                # (and v7x's 64 MiB physical VMEM) with headroom
_TARGET_GRID_STEPS = 8          # >= ~8 steps for large B => pipelined DMA and
                                # >= 4 steps per v7x TensorCore
_PALLAS_MIN_ELEMS = 1 << 18     # below this, a fused XLA add beats launch cost


def _cdiv(a: int, b: int) -> int:
    return -(-a // b)


def _round_up(v: int, m: int) -> int:
    return _cdiv(v, m) * m


def _choose_tiles(n_rows: int, sd: int, itemsize: int, budget: int):
    """Pick (row_tile, sd_tile).

    Live VMEM per grid step ~= 2x double-buffered x-in + 2x double-buffered out
    + 2x double-buffered PE slab == (4*row_tile + 2) * sd_tile * itemsize.
    """
    min_rows = min(n_rows, 8)

    if (4 * min_rows + 2) * sd * itemsize <= budget:
        # Full S*D per block (lane-dense, unmasked stores). Choose the row tile
        # so the grid has ~_TARGET_GRID_STEPS steps for large batches.
        sd_tile = sd
        cap = (budget // (sd * itemsize) - 2) // 4           # rows that fit budget
        want = _round_up(_cdiv(n_rows, _TARGET_GRID_STEPS), 8)
        tb = min(cap, want, n_rows)
        if tb >= n_rows:
            tb = n_rows                                      # full extent: always legal
        else:
            tb = max(8, (tb // 8) * 8)                       # (8,128) rule on sublanes
        return tb, sd_tile

    # Fallback: one minimum row block with full SD does not fit -> tile lanes.
    tb = min_rows                                            # 8, or full B if B < 8
    sd_cap = budget // ((4 * tb + 2) * itemsize)
    sd_tile = max(128, (sd_cap // 128) * 128)                # large multiple of 128
    sd_tile = min(sd_tile, _round_up(sd, 128))
    return tb, sd_tile


# ----------------------------------------------------------------------------
# Forward
# ----------------------------------------------------------------------------
def positional_encoding_forward(x: jnp.ndarray, pe_flat: jnp.ndarray, *,
                                use_pallas=None, donate_x: bool = False,
                                vmem_budget_bytes: int = _VMEM_BUDGET_BYTES
                                ) -> jnp.ndarray:
    """x: (B, S, D); pe_flat: (1, S*D) in x's dtype (from prepare_pe)."""
    B, S, D = x.shape
    SD = S * D
    assert pe_flat.shape == (1, SD) and pe_flat.dtype == x.dtype
    itemsize = x.dtype.itemsize

    if use_pallas is None:
        use_pallas = B * SD >= _PALLAS_MIN_ELEMS
    if not use_pallas:
        # Tiny problem: let XLA fuse the broadcast add into producer/consumer.
        return x + pe_flat.reshape(1, S, D)

    x_flat = x.reshape(B, SD)                   # lane-dense view (contiguous -> free)
    tb, tsd = _choose_tiles(B, SD, itemsize, vmem_budget_bytes)
    grid = (_cdiv(B, tb), _cdiv(SD, tsd))

    out_flat = pl.pallas_call(
        _add_pe_kernel,
        out_shape=jax.ShapeDtypeStruct((B, SD), x.dtype),
        grid_spec=pltpu.PrefetchScalarGridSpec(
            num_scalar_prefetch=0,
            grid=grid,
            in_specs=[
                pl.BlockSpec((tb, tsd), lambda i, j: (i, j)),   # x tile
                pl.BlockSpec((1, tsd), lambda i, j: (0, j)),    # PE slab (row-invariant)
            ],
            out_specs=pl.BlockSpec((tb, tsd), lambda i, j: (i, j)),
        ),
        compiler_params=pltpu.CompilerParams(
            dimension_semantics=("parallel", "parallel"),
        ),
        cost_estimate=pl.CostEstimate(
            flops=B * SD,
            transcendentals=0,
            bytes_accessed=(2 * B * SD + SD) * itemsize,
        ),
        # Only valid if the caller never reads x afterwards (and x_flat did not
        # materialize a copy due to a non-default layout).
        input_output_aliases=({0: 0} if donate_x else {}),
    )(x_flat, pe_flat)

    return out_flat.reshape(B, S, D)


# ----------------------------------------------------------------------------
# Demo / correctness check
# ----------------------------------------------------------------------------
if __name__ == "__main__":
    max_len = 32
    key = jax.random.PRNGKey(0)

    # --- Case 1: module-scale shapes (batch=2, seq=8, d_model=32), grid (1, 1)
    B, S, D = 2, 8, 32
    k1, k2, k3 = jax.random.split(key, 3)
    x1 = jax.random.normal(k1, (B, S, D), dtype=jnp.float32)
    pe_table = make_positional_encoding_table(D, max_len)
    pe1 = prepare_pe(pe_table, S, x1.dtype)
    out1 = jax.block_until_ready(
        positional_encoding_forward(x1, pe1, use_pallas=True))
    ref1 = x1 + pe_table[None, :S, :]
    assert out1.shape == (B, S, D)
    assert jnp.allclose(out1, ref1, atol=1e-6), "case 1 mismatch vs reference"

    # --- Case 2: larger batch -> multi-step pipelined grid (8 steps, tb=8)
    B2, S2, D2 = 64, 16, 32
    x2 = jax.random.normal(k2, (B2, S2, D2), dtype=jnp.float32)
    pe_table2 = make_positional_encoding_table(D2, max_len)
    pe2 = prepare_pe(pe_table2, S2, x2.dtype)
    out2 = jax.block_until_ready(
        positional_encoding_forward(x2, pe2, use_pallas=True))
    ref2 = x2 + pe_table2[None, :S2, :]
    assert jnp.allclose(out2, ref2, atol=1e-6), "case 2 mismatch vs reference"

    # --- Case 3: tiny VMEM budget forces the lane-axis (S*D) tiling fallback
    B3, S3, D3 = 8, 8, 32
    x3 = jax.random.normal(k3, (B3, S3, D3), dtype=jnp.float32)
    pe3 = prepare_pe(pe_table, S3, x3.dtype)
    out3 = jax.block_until_ready(
        positional_encoding_forward(x3, pe3, use_pallas=True,
                                    vmem_budget_bytes=16 * 1024))
    ref3 = x3 + pe_table[None, :S3, :]
    assert jnp.allclose(out3, ref3, atol=1e-6), "case 3 mismatch vs reference"

    print("KERNEL_OK")
</pallas_src>

<mosaic_0001>
module attributes {stable_mosaic.version = 11 : i64} {
  func.func @_add_pe_kernel(%arg0: i32, %arg1: i32, %arg2: memref<2x256xf32, #tpu.memory_space<vmem>>, %arg3: memref<1x256xf32, #tpu.memory_space<vmem>>, %arg4: memref<2x256xf32, #tpu.memory_space<vmem>>) attributes {dimension_semantics = [#tpu.dimension_semantics<parallel>, #tpu.dimension_semantics<parallel>], iteration_bounds = array<i64: 1, 1>, scalar_prefetch = 0 : i64, scratch_operands = 0 : i64, tpu.core_type = #tpu.core_type<tc>, window_params = [{transform_indices = @transform_0, window_bounds = array<i64: 2, 256>}, {transform_indices = @transform_1, window_bounds = array<i64: 1, 256>}, {transform_indices = @transform_2, window_bounds = array<i64: 2, 256>}]} {
    %c0 = arith.constant 0 : index
    %c0_0 = arith.constant 0 : index
    %0 = vector.load %arg2[%c0, %c0_0] : memref<2x256xf32, #tpu.memory_space<vmem>>, vector<2x256xf32>
    %c0_1 = arith.constant 0 : index
    %c0_2 = arith.constant 0 : index
    %1 = vector.load %arg3[%c0_1, %c0_2] : memref<1x256xf32, #tpu.memory_space<vmem>>, vector<1x256xf32>
    %2 = vector.broadcast %1 : vector<1x256xf32> to vector<2x256xf32>
    %3 = arith.addf %0, %2 : vector<2x256xf32>
    %c0_3 = arith.constant 0 : index
    %c0_4 = arith.constant 0 : index
    %4 = vector.load %arg4[%c0_3, %c0_4] : memref<2x256xf32, #tpu.memory_space<vmem>>, vector<2x256xf32>
    tpu.vector_store %arg4[%c0_3, %c0_4], %3 {strides = array<i32>} : memref<2x256xf32, #tpu.memory_space<vmem>>, vector<2x256xf32>,
    return
  }
  func.func @transform_0(%arg0: i32, %arg1: i32) -> (i32, i32) {
    %c0_i32 = arith.constant 0 : i32
    return %arg0, %arg1 : i32, i32
  }
  func.func @transform_1(%arg0: i32, %arg1: i32) -> (i32, i32) {
    %c0_i32 = arith.constant 0 : i32
    %c0_i32_0 = arith.constant 0 : i32
    return %c0_i32, %arg1 : i32, i32
  }
  func.func @transform_2(%arg0: i32, %arg1: i32) -> (i32, i32) {
    %c0_i32 = arith.constant 0 : i32
    return %arg0, %arg1 : i32, i32
  }
}

</mosaic_0001>

<llo_original>
// kernel: tpu_custom_call.1
$region0: #{tpu_custom_call.1}
  #allocation0 [shape = 'u32[]', space=smem, size = 0x4, offset = 0x4, fixed_abs, tag = 'smem constant byte address 0x4 - core index']
  #allocation1 [shape = 'u32[144,128]{1,0:T(1,128)}', space=vmem, size = 0x12000, scoped, tag = 'internal scratch']
  %s0 = inlined_call_operand.hbm [shape: f32[2,256], index: 0, kind: input, shape index: {}]
  %s1 = inlined_call_operand.vmem [shape: f32[1,256], index: 1, kind: input, shape index: {}]
  %s2 = inlined_call_operand.hbm [shape: f32[2,256], index: 2, kind: output, shape index: {}]
  %s3 = sld [smem:[#allocation0]]
  $region22: #{tpu_custom_call.1} parent=0
    _
  %s5 = ssub.s32 1, %s3
  %s6 = scalar_select 0, %s5, %s3
  $region1: #{tpu_custom_call.1} parent=0
    #allocation2 [shape = 'u8[2048]{0}', space=vmem, size = 0x800, scoped, tag = 'input window, operand 0, single buffered']
    #allocation3 [shape = 's32[1]{0}', space=sflag, size = 0x4, scoped, tag = 'scoped memory for tpu_custom_call.1']
    #allocation4 [shape = 's32[1]{0}', space=sflag, size = 0x4, scoped, tag = 'scoped memory for tpu_custom_call.1']
    #allocation5 [shape = 'u8[2048]{0}', space=vmem, size = 0x800, scoped, tag = 'output window, operand 0, single buffered']
    %7 = vsyncpa [#allocation3], 0
    %8 = vsyncpa [#allocation4], 0
    // Predicated region
    $region2: #{tpu_custom_call.1} parent=1 // pred_check
      _
    $region3: #{tpu_custom_call.1} parent=1 // pred_check_branch
      %10 = sbr.rel (0) target = $region5
    $region4: #{tpu_custom_call.1} parent=1 // pred_region
      %s12 = ssub.s32 64, 64
      %13 = vsyncadd [#allocation3], %s12
      %s15 = sshll.u32 [#allocation2], 4
      %s16 = int_to_ptr.vmem [resolvable:$true] %s15
      %18 = dma.hbm_to_vmem [thread:$0]  %s0, 64, %s16, [#allocation3]
    $region5: #{tpu_custom_call.1} parent=1 // pred_fallthru
      _
    // Predicated region
    $region6: #{tpu_custom_call.1} parent=1 // pred_check
      _
    $region7: #{tpu_custom_call.1} parent=1 // pred_check_branch
      %20 = sbr.rel (0) target = $region9
    $region8: #{tpu_custom_call.1} parent=1 // pred_region
      _
    $region9: #{tpu_custom_call.1} parent=1 // pred_fallthru
      _
    // Predicated region
    $region10: #{tpu_custom_call.1} parent=1 // pred_check
      _
    $region11: #{tpu_custom_call.1} parent=1 // pred_check_branch
      %22 = sbr.rel (0) target = $region13
    $region12: #{tpu_custom_call.1} parent=1 // pred_region
      %23 = dma.done [#allocation3], 64
    $region13: #{tpu_custom_call.1} parent=1 // pred_fallthru
      _
    %v24 = vld [vmem:[#allocation2] sm:$0xf]
    %v25 = vld [vmem:[%s1] sm:$0x3]
    %v27 = vlaneseq
    %v28 = vshrl.u32 %v27, 7
    %v29 = vsub.s32 0, %v28
    %v30 = vrot.slane %v25, %v29
    %v31 = vlaneseq
    %v32 = vshrl.u32 %v31, 7
    %v33 = vsub.s32 1, %v32
    %v34 = vrot.slane %v25, %v33
    %v35 = vcombine.low %v30, %v34
    %v37 = vunpack.c.l.s4 1983009808
    %v38 = vunpack.c.0.s8 %v37
    %v39 = vlaneseq
    %v40 = vshrl.u32 %v39, 7
    %v41 = vsub.s32 %v38, %v40
    %v42 = vrot.slane %v35, %v41
    %v44 = vadd.f32 %v24, %v42
    %45 = vst [vmem:[#allocation5] sm:$0xf] %v44
    // Predicated region
    $region14: #{tpu_custom_call.1} parent=1 // pred_check
      _
    $region15: #{tpu_custom_call.1} parent=1 // pred_check_branch
      %47 = sbr.rel (0) target = $region17
    $region16: #{tpu_custom_call.1} parent=1 // pred_region
      %s49 = ssub.s32 64, 64
      %50 = vsyncadd [#allocation4], %s49
      %s52 = sshll.u32 [#allocation5], 4
      %s53 = int_to_ptr.vmem [resolvable:$true] %s52
      %55 = dma.vmem_to_hbm [thread:$0]  %s53, 64, %s2, [#allocation4]
    $region17: #{tpu_custom_call.1} parent=1 // pred_fallthru
      _
    // Predicated region
    $region18: #{tpu_custom_call.1} parent=1 // pred_check
      _
    $region19: #{tpu_custom_call.1} parent=1 // pred_check_branch
      %57 = sbr.rel (0) target = $region21
    $region20: #{tpu_custom_call.1} parent=1 // pred_region
      %58 = dma.done [#allocation4], 64
    $region21: #{tpu_custom_call.1} parent=1 // pred_fallthru
      _
    %59 = vsyncpa [#allocation3], 1
    %60 = vsyncpa [#allocation4], 1

</llo_original>
